<compile_context>
chip_gen: v6e
topology: v6e:2x2x1
jax: 0.10.0
libtpu: 0.0.40
codegen_flags: <defaults>
</compile_context>

<pallas_src>
import functools

import jax
import jax.numpy as jnp
from jax.experimental import pallas as pl
from jax.experimental.pallas import tpu as pltpu


def _round_up(n, m):
    return ((n + m - 1) // m) * m


def topology_net_kernel(x_ref, w1_ref, b1_ref, w2_ref, b2_ref, w3_ref, b3_ref,
                        o_ref):
    # Layer 1: Linear(input_dim, 128) + ReLU   (Dropout = identity in eval)
    h1 = jnp.dot(x_ref[...], w1_ref[...],
                 preferred_element_type=jnp.float32) + b1_ref[...]
    h1 = jnp.maximum(h1, 0.0).astype(jnp.bfloat16)

    # Layer 2: Linear(128, 64) + ReLU          (Dropout = identity in eval)
    h2 = jnp.dot(h1, w2_ref[...],
                 preferred_element_type=jnp.float32) + b2_ref[...]
    h2 = jnp.maximum(h2, 0.0).astype(jnp.bfloat16)

    # Layer 3: Linear(64, num_classes_padded) -> lane-dense logits block
    o_ref[...] = (jnp.dot(h2, w3_ref[...],
                          preferred_element_type=jnp.float32) + b3_ref[...]
                  ).astype(o_ref.dtype)


def _vmem_budget_bytes(bt, in_dim, h1_dim, h2_dim, out_pad):
    """Rough per-step VMEM estimate: double-buffered x/out tiles, resident
    weights, and the h1/h2 temporaries."""
    x_tile = bt * in_dim * 2                      # bf16
    out_tile = bt * out_pad * 4                   # f32
    weights = (in_dim * h1_dim + h1_dim * h2_dim + h2_dim * out_pad) * 2
    biases = (h1_dim + h2_dim + out_pad) * 4
    temps = bt * (h1_dim + h2_dim) * (4 + 2)      # f32 + bf16 copies (rough)
    est = 2 * (x_tile + out_tile) + 2 * (weights + biases) + temps
    # Headroom, but stay well inside v7x's 64 MiB physical VMEM.
    return int(min(max(2 * est, 32 << 20), 48 << 20))


def topology_net_forward(x, params, *, batch_tile=1024):
    """Fused forward pass. x: [B, input_dim] float32. Returns [B, num_classes]
    float32 logits (eval-mode: dropout is identity)."""
    w1, b1, w2, b2, w3, b3 = params
    B, in_dim = x.shape
    h1_dim = w1.shape[1]
    h2_dim = w2.shape[1]
    num_classes = w3.shape[1]

    # Lane-dense output: pad the last layer's output dim to a multiple of 128.
    out_pad = _round_up(max(num_classes, 128), 128)
    if out_pad != num_classes:
        w3 = jnp.pad(w3, ((0, 0), (0, out_pad - num_classes)))
        b3 = jnp.pad(b3, ((0, 0), (0, out_pad - num_classes)))

    # bf16 operands for the MXU; f32 biases so the add happens on the f32 acc.
    xb = x.astype(jnp.bfloat16)
    w1b = w1.astype(jnp.bfloat16)
    w2b = w2.astype(jnp.bfloat16)
    w3b = w3.astype(jnp.bfloat16)
    b1f = b1.astype(jnp.float32)
    b2f = b2.astype(jnp.float32)
    b3f = b3.astype(jnp.float32)

    # Effective batch tile: multiple of 8, never larger than the (rounded-up)
    # batch so tiny batches don't over-pad. Pad B to a multiple of the tile.
    bt = max(8, _round_up(min(batch_tile, _round_up(B, 8)), 8))
    Bp = _round_up(B, bt)
    if Bp != B:
        xb = jnp.pad(xb, ((0, Bp - B), (0, 0)))

    grid = (Bp // bt,)

    out = pl.pallas_call(
        topology_net_kernel,
        out_shape=jax.ShapeDtypeStruct((Bp, out_pad), jnp.float32),
        grid_spec=pltpu.PrefetchScalarGridSpec(
            num_scalar_prefetch=0,
            grid=grid,
            in_specs=[
                # batch-tiled activations
                pl.BlockSpec((bt, in_dim), lambda i: (i, 0)),
                # weights / biases: whole arrays, resident across grid steps
                pl.BlockSpec((in_dim, h1_dim), lambda i: (0, 0)),
                pl.BlockSpec((1, h1_dim), lambda i: (0, 0)),
                pl.BlockSpec((h1_dim, h2_dim), lambda i: (0, 0)),
                pl.BlockSpec((1, h2_dim), lambda i: (0, 0)),
                pl.BlockSpec((h2_dim, out_pad), lambda i: (0, 0)),
                pl.BlockSpec((1, out_pad), lambda i: (0, 0)),
            ],
            out_specs=pl.BlockSpec((bt, out_pad), lambda i: (i, 0)),
        ),
        compiler_params=pltpu.CompilerParams(
            dimension_semantics=("parallel",),
            vmem_limit_bytes=_vmem_budget_bytes(bt, in_dim, h1_dim, h2_dim,
                                                out_pad),
        ),
    )(xb, w1b, b1f, w2b, b2f, w3b, b3f)

    # Strip batch padding and the zero-padded logit columns (must happen
    # before any downstream softmax/argmax).
    return out[:B, :num_classes]


def init_params(key, input_dim, num_classes):
    """Deterministic init mirroring the shapes of TopologyNet.__init__."""
    dims = [(input_dim, 128), (128, 64), (64, num_classes)]
    params = []
    for fan_in, fan_out in dims:
        kw, kb, key = jax.random.split(key, 3)
        bound = 1.0 / jnp.sqrt(fan_in)
        # stored as [in, out] (transposed vs. torch's [out, in])
        w = jax.random.uniform(kw, (fan_in, fan_out), jnp.float32,
                               -bound, bound)
        b = jax.random.uniform(kb, (1, fan_out), jnp.float32, -bound, bound)
        params.extend([w, b])
    return tuple(params)


def reference_forward_bf16(x, params):
    """Plain-JAX reference with the same bf16-operand / f32-accumulate math."""
    w1, b1, w2, b2, w3, b3 = params
    to_bf16 = lambda a: a.astype(jnp.bfloat16)
    h = jnp.dot(to_bf16(x), to_bf16(w1),
                preferred_element_type=jnp.float32) + b1
    h = jnp.maximum(h, 0.0)
    h = jnp.dot(to_bf16(h), to_bf16(w2),
                preferred_element_type=jnp.float32) + b2
    h = jnp.maximum(h, 0.0)
    return jnp.dot(to_bf16(h), to_bf16(w3),
                   preferred_element_type=jnp.float32) + b3


def reference_forward_f32(x, params):
    """Full-f32 reference (coarse check that bf16 error stays small)."""
    w1, b1, w2, b2, w3, b3 = params
    h = jnp.maximum(x @ w1 + b1, 0.0)
    h = jnp.maximum(h @ w2 + b2, 0.0)
    return h @ w3 + b3


if __name__ == "__main__":
    key = jax.random.PRNGKey(0)
    input_dim, num_classes = 32, 10

    kx, kp = jax.random.split(key)
    params = init_params(kp, input_dim, num_classes)

    # Case 1: aligned small batch.
    B = 8
    x = jax.random.normal(kx, (B, input_dim), jnp.float32)
    out = jax.block_until_ready(topology_net_forward(x, params))
    assert out.shape == (B, num_classes)
    ref = reference_forward_bf16(x, params)
    assert jnp.allclose(out, ref, atol=5e-3, rtol=5e-3), "mismatch vs bf16 ref"
    ref32 = reference_forward_f32(x, params)
    assert jnp.allclose(out, ref32, atol=5e-2, rtol=5e-2), "mismatch vs f32 ref"

    # Case 2: ragged batch (exercises the batch-padding path).
    B2 = 10
    x2 = jax.random.normal(jax.random.PRNGKey(1), (B2, input_dim), jnp.float32)
    out2 = jax.block_until_ready(topology_net_forward(x2, params))
    assert out2.shape == (B2, num_classes)
    ref2 = reference_forward_bf16(x2, params)
    assert jnp.allclose(out2, ref2, atol=5e-3, rtol=5e-3), "ragged mismatch"

    print("KERNEL_OK")
</pallas_src>

<mosaic_0001>
module attributes {stable_mosaic.version = 11 : i64} {
  func.func @topology_net_kernel(%arg0: i32, %arg1: memref<8x32xbf16, #tpu.memory_space<vmem>>, %arg2: memref<32x128xbf16, #tpu.memory_space<vmem>>, %arg3: memref<1x128xf32, #tpu.memory_space<vmem>>, %arg4: memref<128x64xbf16, #tpu.memory_space<vmem>>, %arg5: memref<1x64xf32, #tpu.memory_space<vmem>>, %arg6: memref<64x128xbf16, #tpu.memory_space<vmem>>, %arg7: memref<1x128xf32, #tpu.memory_space<vmem>>, %arg8: memref<8x128xf32, #tpu.memory_space<vmem>>) attributes {dimension_semantics = [#tpu.dimension_semantics<parallel>], iteration_bounds = array<i64: 1>, scalar_prefetch = 0 : i64, scratch_operands = 0 : i64, tpu.core_type = #tpu.core_type<tc>, window_params = [{transform_indices = @transform_0, window_bounds = array<i64: 8, 32>}, {pipeline_mode = #tpu.pipeline_mode<synchronous>, transform_indices = @transform_1, window_bounds = array<i64: 32, 128>}, {pipeline_mode = #tpu.pipeline_mode<synchronous>, transform_indices = @transform_2, window_bounds = array<i64: 1, 128>}, {pipeline_mode = #tpu.pipeline_mode<synchronous>, transform_indices = @transform_3, window_bounds = array<i64: 128, 64>}, {pipeline_mode = #tpu.pipeline_mode<synchronous>, transform_indices = @transform_4, window_bounds = array<i64: 1, 64>}, {pipeline_mode = #tpu.pipeline_mode<synchronous>, transform_indices = @transform_5, window_bounds = array<i64: 64, 128>}, {pipeline_mode = #tpu.pipeline_mode<synchronous>, transform_indices = @transform_6, window_bounds = array<i64: 1, 128>}, {transform_indices = @transform_7, window_bounds = array<i64: 8, 128>}]} {
    %c0 = arith.constant 0 : index
    %c0_0 = arith.constant 0 : index
    %0 = vector.load %arg1[%c0, %c0_0] : memref<8x32xbf16, #tpu.memory_space<vmem>>, vector<8x32xbf16>
    %c0_1 = arith.constant 0 : index
    %c0_2 = arith.constant 0 : index
    %1 = vector.load %arg2[%c0_1, %c0_2] : memref<32x128xbf16, #tpu.memory_space<vmem>>, vector<32x128xbf16>
    %cst = arith.constant dense<0.000000e+00> : vector<8x128xf32>
    %2 = tpu.matmul %0, %1, %cst {dimension_numbers = #tpu.dot_dimension_numbers<[1], [0], [0], [1], [0, 0, 1, 1], [], []>} : vector<8x32xbf16>, vector<32x128xbf16>, vector<8x128xf32> -> vector<8x128xf32>
    %c0_3 = arith.constant 0 : index
    %c0_4 = arith.constant 0 : index
    %3 = vector.load %arg3[%c0_3, %c0_4] : memref<1x128xf32, #tpu.memory_space<vmem>>, vector<1x128xf32>
    %4 = vector.broadcast %3 : vector<1x128xf32> to vector<8x128xf32>
    %5 = arith.addf %2, %4 : vector<8x128xf32>
    %cst_5 = arith.constant 0.000000e+00 : f32
    %6 = vector.broadcast %cst_5 : f32 to vector<8x128xf32>
    %7 = arith.maximumf %5, %6 : vector<8x128xf32>
    %8 = arith.truncf %7 : vector<8x128xf32> to vector<8x128xbf16>
    %c0_6 = arith.constant 0 : index
    %c0_7 = arith.constant 0 : index
    %9 = vector.load %arg4[%c0_6, %c0_7] : memref<128x64xbf16, #tpu.memory_space<vmem>>, vector<128x64xbf16>
    %cst_8 = arith.constant dense<0.000000e+00> : vector<8x64xf32>
    %10 = tpu.matmul %8, %9, %cst_8 {dimension_numbers = #tpu.dot_dimension_numbers<[1], [0], [0], [1], [0, 0, 1, 1], [], []>} : vector<8x128xbf16>, vector<128x64xbf16>, vector<8x64xf32> -> vector<8x64xf32>
    %c0_9 = arith.constant 0 : index
    %c0_10 = arith.constant 0 : index
    %11 = vector.load %arg5[%c0_9, %c0_10] : memref<1x64xf32, #tpu.memory_space<vmem>>, vector<1x64xf32>
    %12 = vector.broadcast %11 : vector<1x64xf32> to vector<8x64xf32>
    %13 = arith.addf %10, %12 : vector<8x64xf32>
    %cst_11 = arith.constant 0.000000e+00 : f32
    %14 = vector.broadcast %cst_11 : f32 to vector<8x64xf32>
    %15 = arith.maximumf %13, %14 : vector<8x64xf32>
    %16 = arith.truncf %15 : vector<8x64xf32> to vector<8x64xbf16>
    %c0_12 = arith.constant 0 : index
    %c0_13 = arith.constant 0 : index
    %17 = vector.load %arg6[%c0_12, %c0_13] : memref<64x128xbf16, #tpu.memory_space<vmem>>, vector<64x128xbf16>
    %cst_14 = arith.constant dense<0.000000e+00> : vector<8x128xf32>
    %18 = tpu.matmul %16, %17, %cst_14 {dimension_numbers = #tpu.dot_dimension_numbers<[1], [0], [0], [1], [0, 0, 1, 1], [], []>} : vector<8x64xbf16>, vector<64x128xbf16>, vector<8x128xf32> -> vector<8x128xf32>
    %c0_15 = arith.constant 0 : index
    %c0_16 = arith.constant 0 : index
    %19 = vector.load %arg7[%c0_15, %c0_16] : memref<1x128xf32, #tpu.memory_space<vmem>>, vector<1x128xf32>
    %20 = vector.broadcast %19 : vector<1x128xf32> to vector<8x128xf32>
    %21 = arith.addf %18, %20 : vector<8x128xf32>
    %c0_17 = arith.constant 0 : index
    %c0_18 = arith.constant 0 : index
    %22 = vector.load %arg8[%c0_17, %c0_18] : memref<8x128xf32, #tpu.memory_space<vmem>>, vector<8x128xf32>
    tpu.vector_store %arg8[%c0_17, %c0_18], %21 {strides = array<i32>} : memref<8x128xf32, #tpu.memory_space<vmem>>, vector<8x128xf32>,
    return
  }
  func.func @transform_0(%arg0: i32) -> (i32, i32) {
    %c0_i32 = arith.constant 0 : i32
    %c0_i32_0 = arith.constant 0 : i32
    return %arg0, %c0_i32 : i32, i32
  }
  func.func @transform_1(%arg0: i32) -> (i32, i32) {
    %c0_i32 = arith.constant 0 : i32
    %c0_i32_0 = arith.constant 0 : i32
    %c0_i32_1 = arith.constant 0 : i32
    return %c0_i32, %c0_i32_0 : i32, i32
  }
  func.func @transform_2(%arg0: i32) -> (i32, i32) {
    %c0_i32 = arith.constant 0 : i32
    %c0_i32_0 = arith.constant 0 : i32
    %c0_i32_1 = arith.constant 0 : i32
    return %c0_i32, %c0_i32_0 : i32, i32
  }
  func.func @transform_3(%arg0: i32) -> (i32, i32) {
    %c0_i32 = arith.constant 0 : i32
    %c0_i32_0 = arith.constant 0 : i32
    %c0_i32_1 = arith.constant 0 : i32
    return %c0_i32, %c0_i32_0 : i32, i32
  }
  func.func @transform_4(%arg0: i32) -> (i32, i32) {
    %c0_i32 = arith.constant 0 : i32
    %c0_i32_0 = arith.constant 0 : i32
    %c0_i32_1 = arith.constant 0 : i32
    return %c0_i32, %c0_i32_0 : i32, i32
  }
  func.func @transform_5(%arg0: i32) -> (i32, i32) {
    %c0_i32 = arith.constant 0 : i32
    %c0_i32_0 = arith.constant 0 : i32
    %c0_i32_1 = arith.constant 0 : i32
    return %c0_i32, %c0_i32_0 : i32, i32
  }
  func.func @transform_6(%arg0: i32) -> (i32, i32) {
    %c0_i32 = arith.constant 0 : i32
    %c0_i32_0 = arith.constant 0 : i32
    %c0_i32_1 = arith.constant 0 : i32
    return %c0_i32, %c0_i32_0 : i32, i32
  }
  func.func @transform_7(%arg0: i32) -> (i32, i32) {
    %c0_i32 = arith.constant 0 : i32
    %c0_i32_0 = arith.constant 0 : i32
    return %arg0, %c0_i32 : i32, i32
  }
}

</mosaic_0001>

<llo_original>
// kernel: tpu_custom_call.1
$region0: #{tpu_custom_call.1}
  #allocation0 [shape = 'u32[]', space=smem, size = 0x4, offset = 0x4, fixed_abs, tag = 'smem constant byte address 0x4 - core index']
  #allocation1 [shape = 'u32[144,128]{1,0:T(1,128)}', space=vmem, size = 0x12000, scoped, tag = 'internal scratch']
  %s0 = inlined_call_operand.vmem [shape: bf16[8,32], index: 0, kind: input, shape index: {}]
  %s1 = inlined_call_operand.vmem [shape: bf16[32,128], index: 1, kind: input, shape index: {}]
  %s2 = inlined_call_operand.vmem [shape: f32[1,128], index: 2, kind: input, shape index: {}]
  %s3 = inlined_call_operand.vmem [shape: bf16[128,64], index: 3, kind: input, shape index: {}]
  %s4 = inlined_call_operand.vmem [shape: f32[1,64], index: 4, kind: input, shape index: {}]
  %s5 = inlined_call_operand.vmem [shape: bf16[64,128], index: 5, kind: input, shape index: {}]
  %s6 = inlined_call_operand.vmem [shape: f32[1,128], index: 6, kind: input, shape index: {}]
  %s7 = inlined_call_operand.hbm [shape: f32[8,128], index: 7, kind: output, shape index: {}]
  %s8 = sld [smem:[#allocation0]]
  $region38: #{tpu_custom_call.1} parent=0
    _
  %s10 = ssub.s32 1, %s8
  %s11 = scalar_select 0, %s10, %s8
  $region1: #{tpu_custom_call.1} parent=0
    #allocation2 [shape = 'u8[4096]{0}', space=vmem, size = 0x1000, scoped, tag = 'output window, operand 0, single buffered']
    #allocation3 [shape = 's32[1]{0}', space=sflag, size = 0x4, scoped, tag = 'scoped memory for tpu_custom_call.1']
    %12 = vsyncpa [#allocation3], 0
    // Predicated region
    $region2: #{tpu_custom_call.1} parent=1 // pred_check
      _
    $region3: #{tpu_custom_call.1} parent=1 // pred_check_branch
      %14 = sbr.rel (0) target = $region5
    $region4: #{tpu_custom_call.1} parent=1 // pred_region
      _
    $region5: #{tpu_custom_call.1} parent=1 // pred_fallthru
      _
    // Predicated region
    $region6: #{tpu_custom_call.1} parent=1 // pred_check
      _
    $region7: #{tpu_custom_call.1} parent=1 // pred_check_branch
      %16 = sbr.rel (0) target = $region9
    $region8: #{tpu_custom_call.1} parent=1 // pred_region
      _
    $region9: #{tpu_custom_call.1} parent=1 // pred_fallthru
      _
    // Predicated region
    $region10: #{tpu_custom_call.1} parent=1 // pred_check
      _
    $region11: #{tpu_custom_call.1} parent=1 // pred_check_branch
      %18 = sbr.rel (0) target = $region13
    $region12: #{tpu_custom_call.1} parent=1 // pred_region
      _
    $region13: #{tpu_custom_call.1} parent=1 // pred_fallthru
      _
    // Predicated region
    $region14: #{tpu_custom_call.1} parent=1 // pred_check
      _
    $region15: #{tpu_custom_call.1} parent=1 // pred_check_branch
      %20 = sbr.rel (0) target = $region17
    $region16: #{tpu_custom_call.1} parent=1 // pred_region
      _
    $region17: #{tpu_custom_call.1} parent=1 // pred_fallthru
      _
    // Predicated region
    $region18: #{tpu_custom_call.1} parent=1 // pred_check
      _
    $region19: #{tpu_custom_call.1} parent=1 // pred_check_branch
      %22 = sbr.rel (0) target = $region21
    $region20: #{tpu_custom_call.1} parent=1 // pred_region
      _
    $region21: #{tpu_custom_call.1} parent=1 // pred_fallthru
      _
    // Predicated region
    $region22: #{tpu_custom_call.1} parent=1 // pred_check
      _
    $region23: #{tpu_custom_call.1} parent=1 // pred_check_branch
      %24 = sbr.rel (0) target = $region25
    $region24: #{tpu_custom_call.1} parent=1 // pred_region
      _
    $region25: #{tpu_custom_call.1} parent=1 // pred_fallthru
      _
    // Predicated region
    $region26: #{tpu_custom_call.1} parent=1 // pred_check
      _
    $region27: #{tpu_custom_call.1} parent=1 // pred_check_branch
      %26 = sbr.rel (0) target = $region29
    $region28: #{tpu_custom_call.1} parent=1 // pred_region
      _
    $region29: #{tpu_custom_call.1} parent=1 // pred_fallthru
      _
    %v28 = vld [vmem:[%s0] sm:$0xf]
    %v29 = vld [vmem:[%s1] sm:$0xf]
    %v30 = vld [vmem:[%s1 + $0x4] sm:$0xf]
    %v31 = vld [vmem:[%s1 + $0x8] sm:$0xf]
    %v32 = vld [vmem:[%s1 + $0xc] sm:$0xf]
    %v33 = vld [vmem:[%s2] sm:$0x1]
    %v35 = vlaneseq
    %v36 = vshrl.u32 %v35, 7
    %v37 = vsub.s32 0, %v36
    %v38 = vrot.slane %v33, %v37
    %v44 = vunpack.c.l.b16 %v29
    %v45 = vunpack.c.l.b16 %v30
    %v46 = vunpack.c.l.b16 %v31
    %v47 = vunpack.c.l.b16 %v32
    %v48 = vpack.c.b16 %v45, %v44
    %v49 = vpack.c.b16 %v47, %v46
    %vm52 = vcmask 261120
    %v54 = vsel %vm52, %v28, 0
    %56 = vmatprep.subr.bf16.mxu0 0
    %57 = vmatpush1.bf16.msra.mxu0 0
    %58 = vmatprep.subr.bf16.mxu0 0
    %59 = vmatpush1.bf16.msra.mxu0 0
    %60 = vmatprep.subr.bf16.mxu0 0
    %61 = vmatpush1.bf16.msra.mxu0 0
    %62 = vmatprep.subr.bf16.mxu0 0
    %63 = vmatpush1.bf16.msra.mxu0 0
    %64 = vmatprep.subr.bf16.mxu0 0
    %65 = vmatpush1.bf16.msra.mxu0 0
    %66 = vmatprep.subr.bf16.mxu0 0
    %67 = vmatpush1.bf16.msra.mxu0 0
    %68 = vmatprep.subr.bf16.mxu0 0
    %69 = vmatpush1.bf16.msra.mxu0 %v49
    %70 = vmatprep.subr.bf16.mxu0 0
    %71 = vmatpush1.bf16.msra.mxu0 %v48
    %72 = vmatprep.subr.bf16.mxu0 0
    %73 = vmatpush2.bf16.msra.mxu0 0
    %74 = vmatprep.subr.bf16.mxu0 0
    %75 = vmatpush2.bf16.msra.mxu0 0
    %76 = vmatprep.subr.bf16.mxu0 0
    %77 = vmatpush2.bf16.msra.mxu0 0
    %78 = vmatprep.subr.bf16.mxu0 0
    %79 = vmatpush2.bf16.msra.mxu0 0
    %80 = vmatprep.subr.bf16.mxu0 0
    %81 = vmatpush2.bf16.msra.mxu0 0
    %82 = vmatprep.subr.bf16.mxu0 0
    %83 = vmatpush2.bf16.msra.mxu0 0
    %84 = vmatprep.subr.bf16.mxu0 0
    %85 = vmatpush2.bf16.msra.mxu0 0
    %86 = vmatprep.subr.bf16.mxu0 0
    %87 = vmatpush2.bf16.msra.mxu0 0
    %88 = vmatprep.mubr.bf16.mxu0 0
    %89 = vmatmul.mubr.bf16.gmra.mxu0 %v54
    %v90 = vpop.f32.mrf.mxu0
    %v91 = vadd.f32 %v38, %v90
    %v92 = vpop.f32.mrf.mxu0
    %v93 = vpop.f32.mrf.mxu0
    %v94 = vpop.f32.mrf.mxu0
    %95 = vdwg.mxu0
    %v96 = vmax.f32 %v91, 0.0
    %v97 = vpack.c.bf16 %v96, %v96
    %v98 = vld [vmem:[%s3] sm:$0xf]
    %v99 = vld [vmem:[%s3 + $0x4] sm:$0xf]
    %v100 = vld [vmem:[%s3 + $0x8] sm:$0xf]
    %v101 = vld [vmem:[%s3 + $0xc] sm:$0xf]
    %v102 = vld [vmem:[%s3 + $0x10] sm:$0xf]
    %v103 = vld [vmem:[%s3 + $0x14] sm:$0xf]
    %v104 = vld [vmem:[%s3 + $0x18] sm:$0xf]
    %v105 = vld [vmem:[%s3 + $0x1c] sm:$0xf]
    %v106 = vld [vmem:[%s3 + $0x20] sm:$0xf]
    %v107 = vld [vmem:[%s3 + $0x24] sm:$0xf]
    %v108 = vld [vmem:[%s3 + $0x28] sm:$0xf]
    %v109 = vld [vmem:[%s3 + $0x2c] sm:$0xf]
    %v110 = vld [vmem:[%s3 + $0x30] sm:$0xf]
    %v111 = vld [vmem:[%s3 + $0x34] sm:$0xf]
    %v112 = vld [vmem:[%s3 + $0x38] sm:$0xf]
    %v113 = vld [vmem:[%s3 + $0x3c] sm:$0xf]
    %v114 = vld [vmem:[%s4] sm:$0x1]
    %v116 = vlaneseq
    %v117 = vshrl.u32 %v116, 7
    %v118 = vsub.s32 0, %v117
    %v119 = vrot.slane %v114, %v118
    %v137 = vunpack.c.l.b16 %v98
    %v138 = vunpack.c.l.b16 %v99
    %v139 = vunpack.c.l.b16 %v100
    %v140 = vunpack.c.l.b16 %v101
    %v141 = vunpack.c.l.b16 %v102
    %v142 = vunpack.c.l.b16 %v103
    %v143 = vunpack.c.l.b16 %v104
    %v144 = vunpack.c.l.b16 %v105
    %v145 = vunpack.c.l.b16 %v106
    %v146 = vunpack.c.l.b16 %v107
    %v147 = vunpack.c.l.b16 %v108
    %v148 = vunpack.c.l.b16 %v109
    %v149 = vunpack.c.l.b16 %v110
    %v150 = vunpack.c.l.b16 %v111
    %v151 = vunpack.c.l.b16 %v112
    %v152 = vunpack.c.l.b16 %v113
    %v153 = vpack.c.b16 %v138, %v137
    %v154 = vpack.c.b16 %v140, %v139
    %v155 = vpack.c.b16 %v142, %v141
    %v156 = vpack.c.b16 %v144, %v143
    %v157 = vpack.c.b16 %v146, %v145
    %v158 = vpack.c.b16 %v148, %v147
    %v159 = vpack.c.b16 %v150, %v149
    %v160 = vpack.c.b16 %v152, %v151
    %169 = vmatprep.subr.bf16.mxu0 0
    %170 = vmatpush1.bf16.msra.mxu0 %v160
    %171 = vmatprep.subr.bf16.mxu0 0
    %172 = vmatpush1.bf16.msra.mxu0 %v159
    %173 = vmatprep.subr.bf16.mxu0 0
    %174 = vmatpush1.bf16.msra.mxu0 %v158
    %175 = vmatprep.subr.bf16.mxu0 0
    %176 = vmatpush1.bf16.msra.mxu0 %v157
    %177 = vmatprep.subr.bf16.mxu0 0
    %178 = vmatpush1.bf16.msra.mxu0 %v156
    %179 = vmatprep.subr.bf16.mxu0 0
    %180 = vmatpush1.bf16.msra.mxu0 %v155
    %181 = vmatprep.subr.bf16.mxu0 0
    %182 = vmatpush1.bf16.msra.mxu0 %v154
    %183 = vmatprep.subr.bf16.mxu0 0
    %184 = vmatpush1.bf16.msra.mxu0 %v153
    %185 = vmatprep.subr.bf16.mxu0 0
    %186 = vmatpush2.bf16.msra.mxu0 0
    %187 = vmatprep.subr.bf16.mxu0 0
    %188 = vmatpush2.bf16.msra.mxu0 0
    %189 = vmatprep.subr.bf16.mxu0 0
    %190 = vmatpush2.bf16.msra.mxu0 0
    %191 = vmatprep.subr.bf16.mxu0 0
    %192 = vmatpush2.bf16.msra.mxu0 0
    %193 = vmatprep.subr.bf16.mxu0 0
    %194 = vmatpush2.bf16.msra.mxu0 0
    %195 = vmatprep.subr.bf16.mxu0 0
    %196 = vmatpush2.bf16.msra.mxu0 0
    %197 = vmatprep.subr.bf16.mxu0 0
    %198 = vmatpush2.bf16.msra.mxu0 0
    %199 = vmatprep.subr.bf16.mxu0 0
    %200 = vmatpush2.bf16.msra.mxu0 0
    %201 = vmatprep.mubr.bf16.mxu0 0
    %202 = vmatmul.mubr.bf16.gmra.mxu0 %v97
    %v203 = vpop.f32.mrf.mxu0
    %v204 = vadd.f32 %v119, %v203
    %v205 = vpop.f32.mrf.mxu0
    %v206 = vpop.f32.mrf.mxu0
    %v207 = vpop.f32.mrf.mxu0
    %208 = vdwg.mxu0
    %v209 = vmax.f32 %v204, 0.0
    %v210 = vpack.c.bf16 %v209, %v209
    %v211 = vld [vmem:[%s5] sm:$0xf]
    %v212 = vld [vmem:[%s5 + $0x4] sm:$0xf]
    %v213 = vld [vmem:[%s5 + $0x8] sm:$0xf]
    %v214 = vld [vmem:[%s5 + $0xc] sm:$0xf]
    %v215 = vld [vmem:[%s5 + $0x10] sm:$0xf]
    %v216 = vld [vmem:[%s5 + $0x14] sm:$0xf]
    %v217 = vld [vmem:[%s5 + $0x18] sm:$0xf]
    %v218 = vld [vmem:[%s5 + $0x1c] sm:$0xf]
    %v219 = vld [vmem:[%s6] sm:$0x1]
    %v221 = vlaneseq
    %v222 = vshrl.u32 %v221, 7
    %v223 = vsub.s32 0, %v222
    %v224 = vrot.slane %v219, %v223
    %v234 = vunpack.c.l.b16 %v211
    %v235 = vunpack.c.l.b16 %v212
    %v236 = vunpack.c.l.b16 %v213
    %v237 = vunpack.c.l.b16 %v214
    %v238 = vunpack.c.l.b16 %v215
    %v239 = vunpack.c.l.b16 %v216
    %v240 = vunpack.c.l.b16 %v217
    %v241 = vunpack.c.l.b16 %v218
    %v242 = vpack.c.b16 %v235, %v234
    %v243 = vpack.c.b16 %v237, %v236
    %v244 = vpack.c.b16 %v239, %v238
    %v245 = vpack.c.b16 %v241, %v240
    %vm250 = vcmask 523264
    %v252 = vsel %vm250, %v210, 0
    %254 = vmatprep.subr.bf16.mxu0 0
    %255 = vmatpush1.bf16.msra.mxu0 0
    %256 = vmatprep.subr.bf16.mxu0 0
    %257 = vmatpush1.bf16.msra.mxu0 0
    %258 = vmatprep.subr.bf16.mxu0 0
    %259 = vmatpush1.bf16.msra.mxu0 0
    %260 = vmatprep.subr.bf16.mxu0 0
    %261 = vmatpush1.bf16.msra.mxu0 0
    %262 = vmatprep.subr.bf16.mxu0 0
    %263 = vmatpush1.bf16.msra.mxu0 %v245
    %264 = vmatprep.subr.bf16.mxu0 0
    %265 = vmatpush1.bf16.msra.mxu0 %v244
    %266 = vmatprep.subr.bf16.mxu0 0
    %267 = vmatpush1.bf16.msra.mxu0 %v243
    %268 = vmatprep.subr.bf16.mxu0 0
    %269 = vmatpush1.bf16.msra.mxu0 %v242
    %270 = vmatprep.subr.bf16.mxu0 0
    %271 = vmatpush2.bf16.msra.mxu0 0
    %272 = vmatprep.subr.bf16.mxu0 0
    %273 = vmatpush2.bf16.msra.mxu0 0
    %274 = vmatprep.subr.bf16.mxu0 0
    %275 = vmatpush2.bf16.msra.mxu0 0
    %276 = vmatprep.subr.bf16.mxu0 0
    %277 = vmatpush2.bf16.msra.mxu0 0
    %278 = vmatprep.subr.bf16.mxu0 0
    %279 = vmatpush2.bf16.msra.mxu0 0
    %280 = vmatprep.subr.bf16.mxu0 0
    %281 = vmatpush2.bf16.msra.mxu0 0
    %282 = vmatprep.subr.bf16.mxu0 0
    %283 = vmatpush2.bf16.msra.mxu0 0
    %284 = vmatprep.subr.bf16.mxu0 0
    %285 = vmatpush2.bf16.msra.mxu0 0
    %286 = vmatprep.mubr.bf16.mxu0 0
    %287 = vmatmul.mubr.bf16.gmra.mxu0 %v252
    %v288 = vpop.f32.mrf.mxu0
    %v289 = vadd.f32 %v224, %v288
    %v290 = vpop.f32.mrf.mxu0
    %v291 = vpop.f32.mrf.mxu0
    %v292 = vpop.f32.mrf.mxu0
    %293 = vdwg.mxu0
    %294 = vst [vmem:[#allocation2] sm:$0xff] %v289
    // Predicated region
    $region30: #{tpu_custom_call.1} parent=1 // pred_check
      _
    $region31: #{tpu_custom_call.1} parent=1 // pred_check_branch
      %296 = sbr.rel (0) target = $region33
    $region32: #{tpu_custom_call.1} parent=1 // pred_region
      %s298 = ssub.s32 128, 128
      %299 = vsyncadd [#allocation3], %s298
      %s301 = sshll.u32 [#allocation2], 4
      %s302 = int_to_ptr.vmem [resolvable:$true] %s301
      %304 = dma.vmem_to_hbm [thread:$0]  %s302, 128, %s7, [#allocation3]
    $region33: #{tpu_custom_call.1} parent=1 // pred_fallthru
      _
    // Predicated region
    $region34: #{tpu_custom_call.1} parent=1 // pred_check
      _
    $region35: #{tpu_custom_call.1} parent=1 // pred_check_branch
      %306 = sbr.rel (0) target = $region37
    $region36: #{tpu_custom_call.1} parent=1 // pred_region
      %307 = dma.done [#allocation3], 128
    $region37: #{tpu_custom_call.1} parent=1 // pred_fallthru
      _
    %308 = vsyncpa [#allocation3], 1

</llo_original>
